<compile_context>
chip_gen: v5e
topology: v5e:2x2
jax: 0.10.0
libtpu: 0.0.40
codegen_flags: <defaults>
</compile_context>

<pallas_src>
import math
import functools

import jax
import jax.numpy as jnp
from jax.experimental import pallas as pl
from jax.experimental.pallas import tpu as pltpu


def _dma_copy_kernel(x_hbm_ref, o_hbm_ref, sem):
    # Single whole-array HBM -> HBM DMA.  No VMEM staging, no vreg traffic.
    copy = pltpu.make_async_copy(x_hbm_ref, o_hbm_ref, sem)
    copy.start()
    copy.wait()


def _resolve_shape(total, target_shape):
    """torch.view semantics: resolve a single -1 and check the size."""
    shape = list(target_shape)
    if -1 in shape:
        idx = shape.index(-1)
        known = math.prod(int(s) for i, s in enumerate(shape) if i != idx)
        if known == 0:
            # torch.view rejects inferring -1 alongside a 0-sized dimension.
            raise ValueError("view(): cannot infer -1 with a zero-sized dim")
        if total % known != 0:
            raise ValueError("view(): size mismatch")
        shape[idx] = total // known
    shape = tuple(int(s) for s in shape)
    if math.prod(shape) != total:
        raise ValueError("view(): size mismatch")
    return shape


def pallas_reshape(x, target_shape, use_kernel=True):
    """Equivalent of torch.Tensor.view(target_shape) (row-major).

    use_kernel=False  -> metadata-only jnp.reshape (the truly optimal path).
    use_kernel=True   -> one Pallas HBM->HBM DMA copy, then metadata reshape.
    """
    total = x.size
    shape = _resolve_shape(total, target_shape)

    # Metadata-only fast path, and nothing to copy for empty tensors.
    if not use_kernel or total == 0:
        return jnp.reshape(x, shape)

    itemsize = jnp.dtype(x.dtype).itemsize

    out = pl.pallas_call(
        _dma_copy_kernel,
        out_shape=jax.ShapeDtypeStruct(x.shape, x.dtype),
        in_specs=[pl.BlockSpec(memory_space=pl.ANY)],
        out_specs=pl.BlockSpec(memory_space=pl.ANY),
        scratch_shapes=[pltpu.SemaphoreType.DMA(())],
        cost_estimate=pl.CostEstimate(
            flops=0,
            transcendentals=0,
            bytes_accessed=2 * total * itemsize,
        ),
    )(x)

    # The reshape itself is metadata-only in XLA.
    return jnp.reshape(out, shape)


if __name__ == "__main__":
    key = jax.random.PRNGKey(0)
    # Input consistent with an NCHW tensor: batch=2, channels=4, spatial=16.
    x = jax.random.normal(key, (2, 4, 16, 16), dtype=jnp.float32)

    # Reshape(2, 4, -1) -> (2, 4, 256), same as x.view(2, 4, -1) in PyTorch.
    reshape_fn = jax.jit(
        functools.partial(pallas_reshape, target_shape=(2, 4, -1))
    )
    out = jax.block_until_ready(reshape_fn(x))

    # Reference: pure-JAX row-major reshape.
    ref = x.reshape(2, 4, 256)
    assert out.shape == (2, 4, 256), out.shape
    assert out.dtype == x.dtype
    assert bool(jnp.all(out == ref))

    # Metadata-only path (recommended in production) agrees as well.
    out_meta = jax.block_until_ready(
        jax.jit(
            functools.partial(
                pallas_reshape, target_shape=(2, 4, -1), use_kernel=False
            )
        )(x)
    )
    assert bool(jnp.all(out_meta == ref))

    print("KERNEL_OK")
</pallas_src>

<mosaic_0001>
module attributes {stable_mosaic.version = 11 : i64} {
  func.func @_dma_copy_kernel(%arg0: memref<2x4x16x16xf32, #tpu.memory_space<any>>, %arg1: memref<2x4x16x16xf32, #tpu.memory_space<any>>, %arg2: memref<!tpu.dma_semaphore, #tpu.memory_space<semaphore_mem>>) attributes {dimension_semantics = [], scalar_prefetch = 0 : i64, scratch_operands = 1 : i64, tpu.core_type = #tpu.core_type<tc>} {
    tpu.enqueue_dma source(%arg0 : memref<2x4x16x16xf32, #tpu.memory_space<any>>) target(%arg1 : memref<2x4x16x16xf32, #tpu.memory_space<any>>) target_semaphore(%arg2 : memref<!tpu.dma_semaphore, #tpu.memory_space<semaphore_mem>>)
    tpu.wait_dma2 semaphore(%arg2 : memref<!tpu.dma_semaphore, #tpu.memory_space<semaphore_mem>>) src(%arg0 : memref<2x4x16x16xf32, #tpu.memory_space<any>>) dst(%arg1 : memref<2x4x16x16xf32, #tpu.memory_space<any>>)
    return
  }
}

</mosaic_0001>

<llo_original>
// kernel: pallas_reshape.1
$region0: #{pallas_reshape.1}
  #allocation0 [shape = 'u32[]', space=smem, size = 0x4, offset = 0x4, fixed_abs, tag = 'smem constant byte address 0x4 - core index']
  #allocation1 [shape = 'u32[72,128]{1,0:T(1,128)}', space=vmem, size = 0x9000, scoped, tag = 'internal scratch']
  #allocation2 [shape = 's32[1]{0}', space=sflag, size = 0x4, scoped, tag = 'scratch operand']
  #allocation3 [shape = 's32[]', space=sflag, size = 0x4, offset = 0, fixed_abs, tag = 'sflag constant byte address 0x0 - dummy sync flag']
  #allocation4 [shape = 's32[]', space=sflag, size = 0x4, offset = 0, fixed_abs, tag = 'sflag constant byte address 0x0 - dummy sync flag']
  #allocation5 [shape = 'u32[]', space=smem, size = 0x4, offset = 0x44, fixed_abs, tag = 'smem constant byte address 0x44 - assertion arg 0']
  #allocation6 [shape = 'u32[]', space=smem, size = 0x4, offset = 0x48, fixed_abs, tag = 'smem constant byte address 0x48 - assertion arg 1']
  %s0 = inlined_call_operand.hbm [shape: f32[2,4,16,16], index: 0, kind: input, shape index: {}]
  %s1 = inlined_call_operand.vmem [shape: f32[2,4,16,16], index: 1, kind: output, shape index: {}]
  %s2 = sld [smem:[#allocation0]]
  $region6: #{pallas_reshape.1} parent=0
    _
  %s4 = ssub.s32 1, %s2
  %s5 = scalar_select 0, %s4, %s2
  // Predicated region
  $region2: #{pallas_reshape.1} parent=0 // pred_check
    _
  $region3: #{pallas_reshape.1} parent=0 // pred_check_branch
    %7 = sbr.rel target = $region5
  $region4: #{pallas_reshape.1} parent=0 // pred_region
    %8 = sst [smem:[#allocation5]] [#allocation4]
    %9 = sst [smem:[#allocation6]] [#allocation3]
  $region5: #{pallas_reshape.1} parent=0 // pred_fallthru
    _
  %11 = shalt.err (0)
  %s13 = sshll.u32 %s0, 4
  %s14 = int_to_ptr.hbm [resolvable:$true] %s13
  %s15 = sshll.u32 %s1, 4
  %s16 = int_to_ptr.vmem [resolvable:$true] %s15
  %18 = dma.hbm_to_vmem [thread:$0]  %s14, 2048, %s16, [#allocation2]
  %s19 = smul.u32 2, 4
  %s20 = smul.u32 %s19, 16
  %s21 = smul.u32 %s20, 1
  %s22 = sshll.u32 %s21, 4
  %23 = dma.done [#allocation2], %s22
  %24 = vsyncmov [#allocation2]
  %s25 = vpop.sfrf %24
  %p26 = scmp.eq.s32.totalorder %s25, 0
  %p27 = pneg %p26
  %29 = shalt.err (%p27)

</llo_original>
